<compile_context>
chip_gen: v7x
topology: tpu7x:2x2x1
jax: 0.10.0
libtpu: 0.0.40
codegen_flags: <defaults>
</compile_context>

<pallas_src>
import math

import jax
import jax.numpy as jnp
from jax import lax
from jax.experimental import pallas as pl
from jax.experimental.pallas import tpu as pltpu


_GROUP = 8  # rows per visible loop iteration == one (8, 128) sublane group


def _choose_tile(T, max_tile):
    """Largest multiple of 8 that divides T (<= max_tile); else full extent."""
    for cand in (512, 256, 128, 64, 32, 16, 8):
        if cand <= max_tile and cand <= T and T % cand == 0:
            return cand
    return T  # full-extent block is always a valid BlockSpec shape


def _vmem_limit(need_bytes):
    """Scoped-VMEM override, gated so it never *shrinks* any generation's default.

    Only override when the most conservative default (16 MiB on v5e) would not
    fit, and never request less than the 32 MiB v6e/v7x default.
    """
    if need_bytes > (16 << 20):
        return int(max(need_bytes, 32 << 20))
    return None


# -----------------------------------------------------------------------------
# Path A: VMEM-resident PE table, fused in-kernel row gather + add
# -----------------------------------------------------------------------------
def _pe_add_resident(x, pe_table, idx_flat, tT):
    B, T, D = x.shape
    MAX_LEN = pe_table.shape[0]
    grid = (B, T // tT)
    group = _GROUP if tT % _GROUP == 0 else 1
    n_groups = tT // group
    itemsize = x.dtype.itemsize

    def kernel(idx_ref, x_ref, pe_ref, o_ref):
        # idx_ref: (B*T,) int32 in SMEM (scalar prefetch)
        # x_ref:   (tT, D) block of x (batch dim squeezed)
        # pe_ref:  (MAX_LEN, D) whole PE table, VMEM-resident, single buffer
        # o_ref:   (tT, D) output block
        b = pl.program_id(0)
        tb = pl.program_id(1)
        flat0 = b * T + tb * tT

        def group_body(g, carry):
            base = pl.multiple_of(g * group, group)
            for r in range(group):  # static 8-row group = bounded unroll
                t = base + r
                row = idx_ref[flat0 + t]              # SMEM scalar read
                # Fused gather + add + store (no scratch round trip).
                o_ref[pl.ds(t, 1), :] = (
                    x_ref[pl.ds(t, 1), :] + pe_ref[pl.ds(row, 1), :]
                )
            return carry

        lax.fori_loop(0, n_groups, group_body, 0)

    pe_bytes = MAX_LEN * D * pe_table.dtype.itemsize
    tile_bytes = tT * D * itemsize
    # Single-buffered table + double-buffered x/out blocks + headroom.
    need = pe_bytes + 4 * tile_bytes + (2 << 20)

    grid_spec = pltpu.PrefetchScalarGridSpec(
        num_scalar_prefetch=1,
        grid=grid,
        in_specs=[
            # x block: (tT, D) slab, batch dim squeezed out of the kernel view.
            pl.BlockSpec((None, tT, D), lambda b, t, idx_ref: (b, t, 0)),
            # PE table: whole array placed in VMEM once, single buffer
            # (not part of the grid pipeline -> no double buffering).
            pl.BlockSpec(memory_space=pltpu.MemorySpace.VMEM),
        ],
        out_specs=pl.BlockSpec((None, tT, D), lambda b, t, idx_ref: (b, t, 0)),
    )

    cost = pl.CostEstimate(
        flops=B * T * D,
        transcendentals=0,
        bytes_accessed=2 * B * T * D * itemsize + pe_bytes + B * T * 4,
    )

    return pl.pallas_call(
        kernel,
        out_shape=jax.ShapeDtypeStruct((B, T, D), x.dtype),
        grid_spec=grid_spec,
        compiler_params=pltpu.CompilerParams(
            dimension_semantics=("parallel", "parallel"),
            vmem_limit_bytes=_vmem_limit(need),
        ),
        cost_estimate=cost,
    )(idx_flat, x, pe_table)


# -----------------------------------------------------------------------------
# Path B: small-T regime — rows pre-gathered, dense lane-aligned tiled add
# -----------------------------------------------------------------------------
def _pe_add_pregathered(x, pe_gathered, tT):
    B, T, D = x.shape
    grid = (B, T // tT)
    itemsize = x.dtype.itemsize

    def kernel(x_ref, pe_ref, o_ref):
        o_ref[...] = x_ref[...] + pe_ref[...]

    tile_bytes = tT * D * itemsize
    need = 6 * tile_bytes + (2 << 20)  # 3 arrays, double-buffered, + headroom

    grid_spec = pltpu.PrefetchScalarGridSpec(
        num_scalar_prefetch=0,
        grid=grid,
        in_specs=[
            pl.BlockSpec((None, tT, D), lambda b, t: (b, t, 0)),
            pl.BlockSpec((None, tT, D), lambda b, t: (b, t, 0)),
        ],
        out_specs=pl.BlockSpec((None, tT, D), lambda b, t: (b, t, 0)),
    )

    cost = pl.CostEstimate(
        flops=B * T * D,
        transcendentals=0,
        bytes_accessed=3 * B * T * D * itemsize,
    )

    return pl.pallas_call(
        kernel,
        out_shape=jax.ShapeDtypeStruct((B, T, D), x.dtype),
        grid_spec=grid_spec,
        compiler_params=pltpu.CompilerParams(
            dimension_semantics=("parallel", "parallel"),
            vmem_limit_bytes=_vmem_limit(need),
        ),
        cost_estimate=cost,
    )(x, pe_gathered)


# -----------------------------------------------------------------------------
# Dispatcher
# -----------------------------------------------------------------------------
def positional_encoding_add(x, pe_table, idx, *, max_tile=512, resident_table=None):
    """x: (B, T, D) f32, pe_table: (MAX_LEN, D) f32, idx: (B, T) int32."""
    B, T, D = x.shape
    MAX_LEN = pe_table.shape[0]
    tT = _choose_tile(T, max_tile)
    itemsize = x.dtype.itemsize

    pe_bytes = MAX_LEN * D * pe_table.dtype.itemsize
    x_traffic = 2 * B * T * D * itemsize
    if resident_table is None:
        # Reading the full table once per core only pays off when it does not
        # dwarf the useful x/out traffic (i.e. T is comparable to MAX_LEN).
        resident_table = pe_bytes <= 4 * x_traffic

    if resident_table:
        idx_flat = idx.reshape(-1).astype(jnp.int32)  # 1-D: avoids 2-D SMEM padding
        return _pe_add_resident(x, pe_table, idx_flat, tT)

    # Small-T regime: gather only the T needed rows (HBM traffic ~ work), then
    # a dense, lane/sublane-aligned tiled add in Pallas.
    pe_gathered = jnp.take(pe_table, idx.astype(jnp.int32), axis=0).astype(x.dtype)
    return _pe_add_pregathered(x, pe_gathered, tT)


# -----------------------------------------------------------------------------
# Parameter / glue setup (plain JAX)
# -----------------------------------------------------------------------------
def make_pe_table(max_len, dim):
    """Deterministic sin/cos table identical to the PyTorch __init__."""
    position = jnp.arange(max_len, dtype=jnp.float32)[:, None]           # (L, 1)
    div_term = jnp.exp(
        jnp.arange(0, dim, 2, dtype=jnp.float32) * -(math.log(10000.0) / dim)
    )                                                                     # (D/2,)
    pe = jnp.zeros((max_len, dim), dtype=jnp.float32)
    pe = pe.at[:, 0::2].set(jnp.sin(position * div_term))
    pe = pe.at[:, 1::2].set(jnp.cos(position * div_term))
    return pe


def mask_to_indices(mask, max_true):
    """For each batch row, the positions (ascending) of its True entries.

    The PyTorch forward implicitly requires exactly `max_true` True entries per
    batch row (the reshape would fail otherwise).  Indices are clamped to
    MAX_LEN-1 so a malformed mask cannot drive an out-of-range VMEM read
    (Pallas does not bounds-check VMEM slices) — do NOT remove the clamp.
    """
    max_len = mask.shape[1]
    keyed = jnp.where(mask, jnp.arange(max_len, dtype=jnp.int32), max_len)
    idx = jnp.sort(keyed, axis=1)[:, :max_true]
    return jnp.minimum(idx, max_len - 1).astype(jnp.int32)


def positional_encoding_forward(x, mask, pe_table, **kwargs):
    """Full module forward (inference): gather-add via the Pallas kernel.

    Dropout(p=0.1) is identity in eval/inference mode, so it is omitted.
    """
    idx = mask_to_indices(mask, x.shape[1])
    return positional_encoding_add(x, pe_table, idx, **kwargs)


# -----------------------------------------------------------------------------
# Demo / self-check
# -----------------------------------------------------------------------------
if __name__ == "__main__":
    D = 1024          # dim (hard-coded by the module's reshape to 1024)
    B = 2             # batch
    T = 16            # max_true (sequence length of x)
    MAX_LEN = 64      # small stand-in for max_len=3040

    key = jax.random.PRNGKey(0)
    kx, km = jax.random.split(key)

    x = jax.random.normal(kx, (B, T, D), dtype=jnp.float32)

    # Build a boolean mask with exactly T True entries per batch row.
    mask = jnp.zeros((B, MAX_LEN), dtype=bool)
    for b, kb in enumerate(jax.random.split(km, B)):
        pos = jax.random.permutation(kb, MAX_LEN)[:T]
        mask = mask.at[b, pos].set(True)

    pe_table = make_pe_table(MAX_LEN, D)

    # Pure-JAX reference of the same forward (dropout == identity at inference).
    idx_ref = mask_to_indices(mask, T)
    ref = x + pe_table[idx_ref]

    # Path A (resident table): max_tile=8 forces tT=8 so the demo exercises the
    # T-tiled grid (grid = (B, 2)) and the in-kernel grouped gather+add.
    out_a = positional_encoding_forward(x, mask, pe_table, max_tile=8)
    out_a = jax.block_until_ready(out_a)
    assert out_a.shape == (B, T, D)
    assert jnp.allclose(out_a, ref, atol=1e-6, rtol=1e-6), "resident-path mismatch"

    # Path B (small-T pre-gather + dense tiled add), forced for coverage.
    out_b = positional_encoding_forward(x, mask, pe_table, resident_table=False)
    out_b = jax.block_until_ready(out_b)
    assert out_b.shape == (B, T, D)
    assert jnp.allclose(out_b, ref, atol=1e-6, rtol=1e-6), "pregather-path mismatch"

    print("KERNEL_OK")
</pallas_src>

<mosaic_0001>
module attributes {stable_mosaic.version = 11 : i64} {
  func.func @kernel(%arg0: i32, %arg1: i32, %arg2: memref<32xi32, #tpu.memory_space<smem>>, %arg3: memref<1x8x1024xf32, #tpu.memory_space<vmem>>, %arg4: memref<64x1024xf32, #tpu.memory_space<vmem>>, %arg5: memref<1x8x1024xf32, #tpu.memory_space<vmem>>) attributes {dimension_semantics = [#tpu.dimension_semantics<parallel>, #tpu.dimension_semantics<parallel>], iteration_bounds = array<i64: 2, 2>, scalar_prefetch = 1 : i64, scratch_operands = 0 : i64, tpu.core_type = #tpu.core_type<tc>, window_params = [{transform_indices = @transform_0, window_bounds = array<i64: 1, 8, 1024>}, {pipeline_mode = #tpu.pipeline_mode<synchronous>, transform_indices = @transform_1, window_bounds = array<i64: 64, 1024>}, {transform_indices = @transform_2, window_bounds = array<i64: 1, 8, 1024>}]} {
    %c16_i32 = arith.constant 16 : i32
    %0 = arith.muli %arg0, %c16_i32 : i32
    %c8_i32 = arith.constant 8 : i32
    %1 = arith.muli %arg1, %c8_i32 : i32
    %2 = arith.addi %0, %1 : i32
    %c0_i32 = arith.constant 0 : i32
    %c8_i32_0 = arith.constant 8 : i32
    %3 = arith.muli %c0_i32, %c8_i32_0 : i32
    %4 = tpu.assume_multiple %3, 8 : i32
    %c0_i32_1 = arith.constant 0 : i32
    %5 = arith.addi %4, %c0_i32_1 : i32
    %6 = arith.addi %2, %5 : i32
    %7 = arith.index_cast %6 : i32 to index
    %8 = memref.load %arg2[%7] : memref<32xi32, #tpu.memory_space<smem>>
    %c0 = arith.constant 0 : index
    %9 = arith.index_cast %5 : i32 to index
    %c0_2 = arith.constant 0 : index
    %10 = vector.load %arg3[%c0, %9, %c0_2] : memref<1x8x1024xf32, #tpu.memory_space<vmem>>, vector<1x1x1024xf32>
    %11 = vector.shape_cast %10 : vector<1x1x1024xf32> to vector<1x1024xf32>
    %12 = arith.index_cast %8 : i32 to index
    %c0_3 = arith.constant 0 : index
    %13 = vector.load %arg4[%12, %c0_3] : memref<64x1024xf32, #tpu.memory_space<vmem>>, vector<1x1024xf32>
    %14 = arith.addf %11, %13 : vector<1x1024xf32>
    %c0_4 = arith.constant 0 : index
    %15 = arith.index_cast %5 : i32 to index
    %c0_5 = arith.constant 0 : index
    %16 = vector.load %arg5[%c0_4, %15, %c0_5] : memref<1x8x1024xf32, #tpu.memory_space<vmem>>, vector<1x1x1024xf32>
    %17 = vector.shape_cast %16 : vector<1x1x1024xf32> to vector<1x1024xf32>
    %18 = vector.shape_cast %14 : vector<1x1024xf32> to vector<1x1x1024xf32>
    tpu.vector_store %arg5[%c0_4, %15, %c0_5], %18 {strides = array<i32>} : memref<1x8x1024xf32, #tpu.memory_space<vmem>>, vector<1x1x1024xf32>,
    %c1_i32 = arith.constant 1 : i32
    %19 = arith.addi %4, %c1_i32 : i32
    %20 = arith.addi %2, %19 : i32
    %21 = arith.index_cast %20 : i32 to index
    %22 = memref.load %arg2[%21] : memref<32xi32, #tpu.memory_space<smem>>
    %c0_6 = arith.constant 0 : index
    %23 = arith.index_cast %19 : i32 to index
    %c0_7 = arith.constant 0 : index
    %24 = vector.load %arg3[%c0_6, %23, %c0_7] : memref<1x8x1024xf32, #tpu.memory_space<vmem>>, vector<1x1x1024xf32>
    %25 = vector.shape_cast %24 : vector<1x1x1024xf32> to vector<1x1024xf32>
    %26 = arith.index_cast %22 : i32 to index
    %c0_8 = arith.constant 0 : index
    %27 = vector.load %arg4[%26, %c0_8] : memref<64x1024xf32, #tpu.memory_space<vmem>>, vector<1x1024xf32>
    %28 = arith.addf %25, %27 : vector<1x1024xf32>
    %c0_9 = arith.constant 0 : index
    %29 = arith.index_cast %19 : i32 to index
    %c0_10 = arith.constant 0 : index
    %30 = vector.load %arg5[%c0_9, %29, %c0_10] : memref<1x8x1024xf32, #tpu.memory_space<vmem>>, vector<1x1x1024xf32>
    %31 = vector.shape_cast %30 : vector<1x1x1024xf32> to vector<1x1024xf32>
    %32 = vector.shape_cast %28 : vector<1x1024xf32> to vector<1x1x1024xf32>
    tpu.vector_store %arg5[%c0_9, %29, %c0_10], %32 {strides = array<i32>} : memref<1x8x1024xf32, #tpu.memory_space<vmem>>, vector<1x1x1024xf32>,
    %c2_i32 = arith.constant 2 : i32
    %33 = arith.addi %4, %c2_i32 : i32
    %34 = arith.addi %2, %33 : i32
    %35 = arith.index_cast %34 : i32 to index
    %36 = memref.load %arg2[%35] : memref<32xi32, #tpu.memory_space<smem>>
    %c0_11 = arith.constant 0 : index
    %37 = arith.index_cast %33 : i32 to index
    %c0_12 = arith.constant 0 : index
    %38 = vector.load %arg3[%c0_11, %37, %c0_12] : memref<1x8x1024xf32, #tpu.memory_space<vmem>>, vector<1x1x1024xf32>
    %39 = vector.shape_cast %38 : vector<1x1x1024xf32> to vector<1x1024xf32>
    %40 = arith.index_cast %36 : i32 to index
    %c0_13 = arith.constant 0 : index
    %41 = vector.load %arg4[%40, %c0_13] : memref<64x1024xf32, #tpu.memory_space<vmem>>, vector<1x1024xf32>
    %42 = arith.addf %39, %41 : vector<1x1024xf32>
    %c0_14 = arith.constant 0 : index
    %43 = arith.index_cast %33 : i32 to index
    %c0_15 = arith.constant 0 : index
    %44 = vector.load %arg5[%c0_14, %43, %c0_15] : memref<1x8x1024xf32, #tpu.memory_space<vmem>>, vector<1x1x1024xf32>
    %45 = vector.shape_cast %44 : vector<1x1x1024xf32> to vector<1x1024xf32>
    %46 = vector.shape_cast %42 : vector<1x1024xf32> to vector<1x1x1024xf32>
    tpu.vector_store %arg5[%c0_14, %43, %c0_15], %46 {strides = array<i32>} : memref<1x8x1024xf32, #tpu.memory_space<vmem>>, vector<1x1x1024xf32>,
    %c3_i32 = arith.constant 3 : i32
    %47 = arith.addi %4, %c3_i32 : i32
    %48 = arith.addi %2, %47 : i32
    %49 = arith.index_cast %48 : i32 to index
    %50 = memref.load %arg2[%49] : memref<32xi32, #tpu.memory_space<smem>>
    %c0_16 = arith.constant 0 : index
    %51 = arith.index_cast %47 : i32 to index
    %c0_17 = arith.constant 0 : index
    %52 = vector.load %arg3[%c0_16, %51, %c0_17] : memref<1x8x1024xf32, #tpu.memory_space<vmem>>, vector<1x1x1024xf32>
    %53 = vector.shape_cast %52 : vector<1x1x1024xf32> to vector<1x1024xf32>
    %54 = arith.index_cast %50 : i32 to index
    %c0_18 = arith.constant 0 : index
    %55 = vector.load %arg4[%54, %c0_18] : memref<64x1024xf32, #tpu.memory_space<vmem>>, vector<1x1024xf32>
    %56 = arith.addf %53, %55 : vector<1x1024xf32>
    %c0_19 = arith.constant 0 : index
    %57 = arith.index_cast %47 : i32 to index
    %c0_20 = arith.constant 0 : index
    %58 = vector.load %arg5[%c0_19, %57, %c0_20] : memref<1x8x1024xf32, #tpu.memory_space<vmem>>, vector<1x1x1024xf32>
    %59 = vector.shape_cast %58 : vector<1x1x1024xf32> to vector<1x1024xf32>
    %60 = vector.shape_cast %56 : vector<1x1024xf32> to vector<1x1x1024xf32>
    tpu.vector_store %arg5[%c0_19, %57, %c0_20], %60 {strides = array<i32>} : memref<1x8x1024xf32, #tpu.memory_space<vmem>>, vector<1x1x1024xf32>,
    %c4_i32 = arith.constant 4 : i32
    %61 = arith.addi %4, %c4_i32 : i32
    %62 = arith.addi %2, %61 : i32
    %63 = arith.index_cast %62 : i32 to index
    %64 = memref.load %arg2[%63] : memref<32xi32, #tpu.memory_space<smem>>
    %c0_21 = arith.constant 0 : index
    %65 = arith.index_cast %61 : i32 to index
    %c0_22 = arith.constant 0 : index
    %66 = vector.load %arg3[%c0_21, %65, %c0_22] : memref<1x8x1024xf32, #tpu.memory_space<vmem>>, vector<1x1x1024xf32>
    %67 = vector.shape_cast %66 : vector<1x1x1024xf32> to vector<1x1024xf32>
    %68 = arith.index_cast %64 : i32 to index
    %c0_23 = arith.constant 0 : index
    %69 = vector.load %arg4[%68, %c0_23] : memref<64x1024xf32, #tpu.memory_space<vmem>>, vector<1x1024xf32>
    %70 = arith.addf %67, %69 : vector<1x1024xf32>
    %c0_24 = arith.constant 0 : index
    %71 = arith.index_cast %61 : i32 to index
    %c0_25 = arith.constant 0 : index
    %72 = vector.load %arg5[%c0_24, %71, %c0_25] : memref<1x8x1024xf32, #tpu.memory_space<vmem>>, vector<1x1x1024xf32>
    %73 = vector.shape_cast %72 : vector<1x1x1024xf32> to vector<1x1024xf32>
    %74 = vector.shape_cast %70 : vector<1x1024xf32> to vector<1x1x1024xf32>
    tpu.vector_store %arg5[%c0_24, %71, %c0_25], %74 {strides = array<i32>} : memref<1x8x1024xf32, #tpu.memory_space<vmem>>, vector<1x1x1024xf32>,
    %c5_i32 = arith.constant 5 : i32
    %75 = arith.addi %4, %c5_i32 : i32
    %76 = arith.addi %2, %75 : i32
    %77 = arith.index_cast %76 : i32 to index
    %78 = memref.load %arg2[%77] : memref<32xi32, #tpu.memory_space<smem>>
    %c0_26 = arith.constant 0 : index
    %79 = arith.index_cast %75 : i32 to index
    %c0_27 = arith.constant 0 : index
    %80 = vector.load %arg3[%c0_26, %79, %c0_27] : memref<1x8x1024xf32, #tpu.memory_space<vmem>>, vector<1x1x1024xf32>
    %81 = vector.shape_cast %80 : vector<1x1x1024xf32> to vector<1x1024xf32>
    %82 = arith.index_cast %78 : i32 to index
    %c0_28 = arith.constant 0 : index
    %83 = vector.load %arg4[%82, %c0_28] : memref<64x1024xf32, #tpu.memory_space<vmem>>, vector<1x1024xf32>
    %84 = arith.addf %81, %83 : vector<1x1024xf32>
    %c0_29 = arith.constant 0 : index
    %85 = arith.index_cast %75 : i32 to index
    %c0_30 = arith.constant 0 : index
    %86 = vector.load %arg5[%c0_29, %85, %c0_30] : memref<1x8x1024xf32, #tpu.memory_space<vmem>>, vector<1x1x1024xf32>
    %87 = vector.shape_cast %86 : vector<1x1x1024xf32> to vector<1x1024xf32>
    %88 = vector.shape_cast %84 : vector<1x1024xf32> to vector<1x1x1024xf32>
    tpu.vector_store %arg5[%c0_29, %85, %c0_30], %88 {strides = array<i32>} : memref<1x8x1024xf32, #tpu.memory_space<vmem>>, vector<1x1x1024xf32>,
    %c6_i32 = arith.constant 6 : i32
    %89 = arith.addi %4, %c6_i32 : i32
    %90 = arith.addi %2, %89 : i32
    %91 = arith.index_cast %90 : i32 to index
    %92 = memref.load %arg2[%91] : memref<32xi32, #tpu.memory_space<smem>>
    %c0_31 = arith.constant 0 : index
    %93 = arith.index_cast %89 : i32 to index
    %c0_32 = arith.constant 0 : index
    %94 = vector.load %arg3[%c0_31, %93, %c0_32] : memref<1x8x1024xf32, #tpu.memory_space<vmem>>, vector<1x1x1024xf32>
    %95 = vector.shape_cast %94 : vector<1x1x1024xf32> to vector<1x1024xf32>
    %96 = arith.index_cast %92 : i32 to index
    %c0_33 = arith.constant 0 : index
    %97 = vector.load %arg4[%96, %c0_33] : memref<64x1024xf32, #tpu.memory_space<vmem>>, vector<1x1024xf32>
    %98 = arith.addf %95, %97 : vector<1x1024xf32>
    %c0_34 = arith.constant 0 : index
    %99 = arith.index_cast %89 : i32 to index
    %c0_35 = arith.constant 0 : index
    %100 = vector.load %arg5[%c0_34, %99, %c0_35] : memref<1x8x1024xf32, #tpu.memory_space<vmem>>, vector<1x1x1024xf32>
    %101 = vector.shape_cast %100 : vector<1x1x1024xf32> to vector<1x1024xf32>
    %102 = vector.shape_cast %98 : vector<1x1024xf32> to vector<1x1x1024xf32>
    tpu.vector_store %arg5[%c0_34, %99, %c0_35], %102 {strides = array<i32>} : memref<1x8x1024xf32, #tpu.memory_space<vmem>>, vector<1x1x1024xf32>,
    %c7_i32 = arith.constant 7 : i32
    %103 = arith.addi %4, %c7_i32 : i32
    %104 = arith.addi %2, %103 : i32
    %105 = arith.index_cast %104 : i32 to index
    %106 = memref.load %arg2[%105] : memref<32xi32, #tpu.memory_space<smem>>
    %c0_36 = arith.constant 0 : index
    %107 = arith.index_cast %103 : i32 to index
    %c0_37 = arith.constant 0 : index
    %108 = vector.load %arg3[%c0_36, %107, %c0_37] : memref<1x8x1024xf32, #tpu.memory_space<vmem>>, vector<1x1x1024xf32>
    %109 = vector.shape_cast %108 : vector<1x1x1024xf32> to vector<1x1024xf32>
    %110 = arith.index_cast %106 : i32 to index
    %c0_38 = arith.constant 0 : index
    %111 = vector.load %arg4[%110, %c0_38] : memref<64x1024xf32, #tpu.memory_space<vmem>>, vector<1x1024xf32>
    %112 = arith.addf %109, %111 : vector<1x1024xf32>
    %c0_39 = arith.constant 0 : index
    %113 = arith.index_cast %103 : i32 to index
    %c0_40 = arith.constant 0 : index
    %114 = vector.load %arg5[%c0_39, %113, %c0_40] : memref<1x8x1024xf32, #tpu.memory_space<vmem>>, vector<1x1x1024xf32>
    %115 = vector.shape_cast %114 : vector<1x1x1024xf32> to vector<1x1024xf32>
    %116 = vector.shape_cast %112 : vector<1x1024xf32> to vector<1x1x1024xf32>
    tpu.vector_store %arg5[%c0_39, %113, %c0_40], %116 {strides = array<i32>} : memref<1x8x1024xf32, #tpu.memory_space<vmem>>, vector<1x1x1024xf32>,
    %c1_i32_41 = arith.constant 1 : i32
    return
  }
  func.func @transform_0(%arg0: i32, %arg1: i32, %arg2: memref<32xi32, #tpu.memory_space<smem>>) -> (i32, i32, i32) {
    %c0_i32 = arith.constant 0 : i32
    %c0_i32_0 = arith.constant 0 : i32
    return %arg0, %arg1, %c0_i32 : i32, i32, i32
  }
  func.func @transform_1(%arg0: i32, %arg1: i32, %arg2: memref<32xi32, #tpu.memory_space<smem>>) -> (i32, i32) {
    %c0_i32 = arith.constant 0 : i32
    %c0_i32_0 = arith.constant 0 : i32
    %c0_i32_1 = arith.constant 0 : i32
    return %c0_i32, %c0_i32_0 : i32, i32
  }
  func.func @transform_2(%arg0: i32, %arg1: i32, %arg2: memref<32xi32, #tpu.memory_space<smem>>) -> (i32, i32, i32) {
    %c0_i32 = arith.constant 0 : i32
    %c0_i32_0 = arith.constant 0 : i32
    return %arg0, %arg1, %c0_i32 : i32, i32, i32
  }
}

</mosaic_0001>

<llo_original>
// kernel: tpu_custom_call.1
$region0: #{tpu_custom_call.1}
  #allocation0 [shape = 'u32[]', space=smem, size = 0x4, offset = 0x4, fixed_abs, tag = 'smem constant byte address 0x4 - core index']
  #allocation1 [shape = 'u32[144,128]{1,0:T(1,128)}', space=vmem, size = 0x12000, scoped, tag = 'internal scratch']
  #allocation2 [shape = 's32[1]{0}', space=sflag, size = 0x4, scoped, tag = 'scoped memory for tpu_custom_call.1']
  #allocation3 [shape = 'u8[512]{0}', space=smem, size = 0x200, scoped, tag = 'prefetched SMEM operand 0']
  %s0 = inlined_call_operand.hbm [shape: s32[32], index: 0, kind: input, shape index: {}]
  %s1 = inlined_call_operand.hbm [shape: f32[2,16,1024], index: 1, kind: input, shape index: {}]
  %s2 = inlined_call_operand.hbm [shape: f32[64,1024], index: 2, kind: input, shape index: {}]
  %s3 = inlined_call_operand.hbm [shape: f32[2,16,1024], index: 3, kind: output, shape index: {}]
  %s4 = sld [smem:[#allocation0]]
  $region49: #{tpu_custom_call.1} parent=0
    _
  %s6 = ssub.s32 1, %s4
  %s7 = scalar_select 0, %s6, %s4
  %9 = dma.hbm_to_smem %s0, 16, [#allocation3], [#allocation2]
  %10 = dma.done [#allocation2], 16
  %11 = sfence
  $region1: #{tpu_custom_call.1} parent=0
    #allocation4 [shape = 'u8[65536]{0}', space=vmem, size = 0x10000, scoped, tag = 'input window, operand 1']
    #allocation5 [shape = 's32[2]{0}', space=sflag, size = 0x8, scoped, tag = 'scoped memory for tpu_custom_call.1']
    #allocation6 [shape = 's32[2]{0}', space=sflag, size = 0x8, scoped, tag = 'scoped memory for tpu_custom_call.1']
    #allocation7 [shape = 'u8[262144]{0}', space=vmem, size = 0x40000, scoped, tag = 'input window, operand 2, single buffered']
    #allocation8 [shape = 's32[1]{0}', space=sflag, size = 0x4, scoped, tag = 'scoped memory for tpu_custom_call.1']
    #allocation9 [shape = 'u8[65536]{0}', space=vmem, size = 0x10000, scoped, tag = 'output window, operand 0']
    %12 = vsyncpa [#allocation5], 0
    %s13 = scalar_lea.sflag [#allocation5], 1
    %14 = vsyncpa %s13, 0
    %15 = vsyncpa [#allocation8], 0
    %16 = vsyncpa [#allocation6], 0
    %s17 = scalar_lea.sflag [#allocation6], 1
    %18 = vsyncpa %s17, 0
    loop: start=0, step=1, limit=6
    $region2: #{tpu_custom_call.1} parent=1 // loop_pre_header
      _
    $region3: #{tpu_custom_call.1} parent=1 // loop_header
      %s20 = sphi 0, %s24
      %p21 = scmp.ge.s32.totalorder %s20, 6
      %s27 = sphi 0, %s39
      %s28 = sphi 0, %s35
      %s29 = sphi 0, %s27
      %s30 = sphi 0, %s28
      %s31 = sphi 0, %s29
      %s32 = sphi 0, %s30
      %s44 = sphi 0, %s46
      %s47 = sphi 0, %s44
      %s48 = sphi 0, %s47
      %s64 = sphi 0, %s48
      %s68 = sphi 0, %s68
      %s70 = sphi 0, %s68
      %s71 = sphi 0, %s70
      %s85 = sphi 0, %s71
      %s93 = sphi 0, %s95
      %s96 = sphi 0, %s93
      %s97 = sphi 0, %s96
      %s113 = sphi 0, %s97
    $region4: #{tpu_custom_call.1} parent=1 // loop_header_branch
      %23 = sbr.rel (%p21) target = $region8
    $region5: #{tpu_custom_call.1} parent=1 // loop_body
      %s25 = ssub.s32 %s20, 1
      %s26 = ssub.s32 %s20, 2
      %s33 = sadd.s32 1, %s28
      %p34 = scmp.ge.s32.totalorder %s33, 2
      %s35 = scalar_select %p34, 0, %s33
      %s36 = sadd.s32 1, %s27
      %s37 = scalar_select %p34, %s36, %s27
      %p38 = scmp.ge.s32.totalorder %s37, 2
      %s39 = scalar_select %p38, 0, %s37
      %s40 = ssub.s32 %s27, %s39
      %s41 = ssub.s32 %s28, %s35
      %s42 = sor.u32 %s40, %s41
      %p43 = scmp.eq.s32.totalorder %s42, 0
      %s45 = sadd.s32 %s44, 1
      %s46 = scalar_select %p43, %s44, %s45
      %p49 = pneg %p43
      %p50 = scmp.eq.s32.totalorder %s20, 3
      %p51 = por %p49, %p50
      %p52 = scmp.ne.s32.totalorder %s44, %s47
      %p53 = scmp.eq.s32.totalorder %s20, 0
      %p54 = por %p52, %p53
      %p55 = scmp.ne.s32.totalorder %s44, %s47
      %p56 = scmp.eq.s32.totalorder %s25, 3
      %p57 = por %p55, %p56
      %p58 = scmp.ne.s32.totalorder %s47, %s48
      %p59 = scmp.eq.s32.totalorder %s25, 0
      %p60 = por %p58, %p59
      %p61 = scmp.ne.s32.totalorder %s47, %s48
      %p62 = scmp.eq.s32.totalorder %s26, 3
      %p63 = por %p61, %p62
      %p65 = scmp.ne.s32.totalorder %s48, %s64
      %p66 = scmp.eq.s32.totalorder %s26, 0
      %p67 = por %p65, %p66
      %s69 = sadd.s32 %s68, 1
      %p72 = scmp.eq.s32.totalorder %s20, 3
      %p73 = scmp.ne.s32.totalorder %s68, %s70
      %p74 = scmp.eq.s32.totalorder %s20, 0
      %p75 = por %p73, %p74
      %p76 = scmp.ne.s32.totalorder %s68, %s70
      %p77 = scmp.eq.s32.totalorder %s25, 3
      %p78 = por %p76, %p77
      %p79 = scmp.ne.s32.totalorder %s70, %s71
      %p80 = scmp.eq.s32.totalorder %s25, 0
      %p81 = por %p79, %p80
      %p82 = scmp.ne.s32.totalorder %s70, %s71
      %p83 = scmp.eq.s32.totalorder %s26, 3
      %p84 = por %p82, %p83
      %p86 = scmp.ne.s32.totalorder %s71, %s85
      %p87 = scmp.eq.s32.totalorder %s26, 0
      %p88 = por %p86, %p87
      %s89 = ssub.s32 %s27, %s39
      %s90 = ssub.s32 %s28, %s35
      %s91 = sor.u32 %s89, %s90
      %p92 = scmp.eq.s32.totalorder %s91, 0
      %s94 = sadd.s32 %s93, 1
      %s95 = scalar_select %p92, %s93, %s94
      %p98 = pneg %p92
      %p99 = scmp.eq.s32.totalorder %s20, 3
      %p100 = por %p98, %p99
      %p101 = scmp.ne.s32.totalorder %s93, %s96
      %p102 = scmp.eq.s32.totalorder %s20, 0
      %p103 = por %p101, %p102
      %p104 = scmp.ne.s32.totalorder %s93, %s96
      %p105 = scmp.eq.s32.totalorder %s25, 3
      %p106 = por %p104, %p105
      %p107 = scmp.ne.s32.totalorder %s96, %s97
      %p108 = scmp.eq.s32.totalorder %s25, 0
      %p109 = por %p107, %p108
      %p110 = scmp.ne.s32.totalorder %s96, %s97
      %p111 = scmp.eq.s32.totalorder %s26, 3
      %p112 = por %p110, %p111
      %p114 = scmp.ne.s32.totalorder %s97, %s113
      %p115 = scmp.eq.s32.totalorder %s26, 0
      %p116 = por %p114, %p115
      %p117 = scmp.le.s32.totalorder 1, %s20
      %p118 = scmp.lt.s32.totalorder %s20, 5
      %p119 = pnand %p117, %p118
      %p120 = pneg %p119
      // Predicated region
      $region9: #{tpu_custom_call.1} parent=5 // pred_check
        _
      $region10: #{tpu_custom_call.1} parent=5 // pred_check_branch
        %122 = sbr.rel (%p119) target = $region12
      $region11: #{tpu_custom_call.1} parent=5 // pred_region
        %s123 = ssub.s32 %s20, 1
        // Predicated region
        $region13: #{tpu_custom_call.1} parent=11 // pred_check
          %p124 = pneg %p81
        $region14: #{tpu_custom_call.1} parent=11 // pred_check_branch
          %126 = sbr.rel (%p124) target = $region16
        $region15: #{tpu_custom_call.1} parent=11 // pred_region
          %s128 = ssub.s32 8192, 8192
          %129 = vsyncadd [#allocation8], %s128
          %s130 = sshll.u32 [#allocation7], 4
          %s131 = int_to_ptr.vmem [resolvable:$true] %s130
          %136 = dma.hbm_to_vmem [thread:$0]  %s2, 8192, %s131, [#allocation8], 1024, 1024, 64
        $region16: #{tpu_custom_call.1} parent=11 // pred_fallthru
          _
      $region12: #{tpu_custom_call.1} parent=5 // pred_fallthru
        _
      %p137 = scmp.lt.s32.totalorder %s20, 4
      // Predicated region
      $region17: #{tpu_custom_call.1} parent=5 // pred_check
        %p138 = pneg %p137
      $region18: #{tpu_custom_call.1} parent=5 // pred_check_branch
        %140 = sbr.rel (%p138) target = $region20
      $region19: #{tpu_custom_call.1} parent=5 // pred_region
        // Predicated region
        $region21: #{tpu_custom_call.1} parent=19 // pred_check
          %p141 = pneg %p54
        $region22: #{tpu_custom_call.1} parent=19 // pred_check_branch
          %143 = sbr.rel (%p141) target = $region24
        $region23: #{tpu_custom_call.1} parent=19 // pred_region
          %s144 = sand.u32 %s44, 1
          %s145 = scalar_lea.sflag [#allocation5], %s144
          %s146 = sand.u32 %s44, 1
          %s147 = smul.addr %s146, 64
          %s148 = scalar_lea.vmem [#allocation4], %s147
          %s150 = ssub.s32 1024, 1024
          %151 = vsyncadd %s145, %s150
          %s152 = smul.addr %s28, 8
          %s153 = smul.addr %s27, 16
          %s154 = sadd.s32 %s152, %s153
          %s155 = smul.addr %s154, 128
          %s156 = scalar_lea.hbm %s1, %s155
          %s158 = sshll.u32 %s148, 4
          %s159 = int_to_ptr.vmem [resolvable:$true] %s158
          %161 = dma.hbm_to_vmem [thread:$0]  %s156, 1024, %s159, %s145
        $region24: #{tpu_custom_call.1} parent=19 // pred_fallthru
          _
      $region20: #{tpu_custom_call.1} parent=5 // pred_fallthru
        _
      %p162 = scmp.le.s32.totalorder 1, %s20
      %p163 = scmp.lt.s32.totalorder %s20, 5
      %p164 = pnand %p162, %p163
      %p165 = pneg %p164
      // Predicated region
      $region25: #{tpu_custom_call.1} parent=5 // pred_check
        _
      $region26: #{tpu_custom_call.1} parent=5 // pred_check_branch
        %167 = sbr.rel (%p164) target = $region28
      $region27: #{tpu_custom_call.1} parent=5 // pred_region
        %s168 = ssub.s32 %s20, 1
        %s169 = sand.u32 %s47, 1
        %s170 = scalar_lea.sflag [#allocation5], %s169
        %s171 = sand.u32 %s47, 1
        %s172 = smul.addr %s171, 64
        %s173 = scalar_lea.vmem [#allocation4], %s172
        // Predicated region
        $region29: #{tpu_custom_call.1} parent=27 // pred_check
          %p174 = pneg %p60
        $region30: #{tpu_custom_call.1} parent=27 // pred_check_branch
          %176 = sbr.rel (%p174) target = $region32
        $region31: #{tpu_custom_call.1} parent=27 // pred_region
          %177 = dma.done %s170, 1024
        $region32: #{tpu_custom_call.1} parent=27 // pred_fallthru
          _
        // Predicated region
        $region33: #{tpu_custom_call.1} parent=27 // pred_check
          %p178 = pneg %p81
        $region34: #{tpu_custom_call.1} parent=27 // pred_check_branch
          %180 = sbr.rel (%p178) target = $region36
        $region35: #{tpu_custom_call.1} parent=27 // pred_region
          %181 = dma.done [#allocation8], 8192
        $region36: #{tpu_custom_call.1} parent=27 // pred_fallthru
          _
        %s182 = sand.u32 %s47, 1
        %s183 = scalar_lea.sflag [#allocation5], %s182
        %s184 = sand.u32 %s47, 1
        %s185 = smul.addr %s184, 64
        %s186 = scalar_lea.vmem [#allocation4], %s185
        %p187 = pneg %p60
        %p188 = pneg %p57
        %p189 = pneg %p81
        %p190 = pneg %p78
        %p191 = pneg %p109
        %p192 = pneg %p106
        %s193 = sand.u32 %s96, 1
        %s194 = scalar_lea.sflag [#allocation6], %s193
        %s195 = sand.u32 %s96, 1
        %s196 = smul.addr %s195, 64
        %s197 = scalar_lea.vmem [#allocation9], %s196
        %s198 = smul.u32 %s29, 16
        %s199 = smul.u32 %s30, 8
        %s200 = sadd.s32 %s198, %s199
        %s201 = sadd.s32 %s200, 0
        %s202 = sld [smem:[#allocation3 + %s201]]
        %s203 = smul.u32 0, 8
        %s204 = smul.addr %s203, 8
        %s205 = scalar_lea.vmem %s173, %s204 [#allocation4]
        %v206 = vld [vmem:[%s205] ss:$8 sm:$0xf]
        %v207 = vld [vmem:[%s205] ss:$8 sm:$0xf0]
        %v208 = vor.u32 %v206, %v207
        %s209 = sshra.s32 %s202, 3
        %s210 = sand.u32 %s202, 7
        %s211 = sshra.s32 %s202, 3
        %s212 = sand.u32 %s202, 7
        %s213 = smul.u32 %s209, 8
        %s214 = smul.u32 %s213, 8
        %s215 = sadd.s32 %s214, %s212
        %s216 = scalar_lea.vmem [#allocation7], %s215
        %v217 = vld [vmem:[%s216] ss:$8 sm:$0xf]
        %v218 = vld [vmem:[%s216] ss:$8 sm:$0xf0]
        %v219 = vor.u32 %v217, %v218
        %v220 = vadd.f32 %v208, %v219
        %s221 = smul.addr %s203, 8
        %s222 = scalar_lea.vmem %s197, %s221 [#allocation9]
        %223 = vst [vmem:[%s222] ss:$8 sm:$0xf] %v220
        %224 = vst [vmem:[%s222] ss:$8 sm:$0xf0] %v220
        %s225 = sadd.s32 0, 1
        %s226 = sadd.s32 %s200, %s225
        %s227 = sld [smem:[#allocation3 + %s226]]
        %s228 = sshra.s32 %s225, 3
        %s229 = sand.u32 %s225, 7
        %s230 = sshra.s32 %s225, 3
        %s231 = sand.u32 %s225, 7
        %s232 = smul.u32 %s228, 8
        %s233 = smul.u32 %s232, 8
        %s234 = sadd.s32 %s233, %s231
        %s235 = scalar_lea.vmem %s173, %s234 [#allocation4]
        %v236 = vld [vmem:[%s235] ss:$8 sm:$0xf]
        %v237 = vld [vmem:[%s235] ss:$8 sm:$0xf0]
        %v238 = vor.u32 %v236, %v237
        %s239 = sshra.s32 %s227, 3
        %s240 = sand.u32 %s227, 7
        %s241 = sshra.s32 %s227, 3
        %s242 = sand.u32 %s227, 7
        %s243 = smul.u32 %s239, 8
        %s244 = smul.u32 %s243, 8
        %s245 = sadd.s32 %s244, %s242
        %s246 = scalar_lea.vmem [#allocation7], %s245
        %v247 = vld [vmem:[%s246] ss:$8 sm:$0xf]
        %v248 = vld [vmem:[%s246] ss:$8 sm:$0xf0]
        %v249 = vor.u32 %v247, %v248
        %v250 = vadd.f32 %v238, %v249
        %s251 = scalar_lea.vmem %s197, %s234 [#allocation9]
        %252 = vst [vmem:[%s251] ss:$8 sm:$0xf] %v250
        %253 = vst [vmem:[%s251] ss:$8 sm:$0xf0] %v250
        %s254 = sadd.s32 0, 2
        %s255 = sadd.s32 %s200, %s254
        %s256 = sld [smem:[#allocation3 + %s255]]
        %s257 = sshra.s32 %s254, 3
        %s258 = sand.u32 %s254, 7
        %s259 = sshra.s32 %s254, 3
        %s260 = sand.u32 %s254, 7
        %s261 = smul.u32 %s257, 8
        %s262 = smul.u32 %s261, 8
        %s263 = sadd.s32 %s262, %s260
        %s264 = scalar_lea.vmem %s173, %s263 [#allocation4]
        %v265 = vld [vmem:[%s264] ss:$8 sm:$0xf]
        %v266 = vld [vmem:[%s264] ss:$8 sm:$0xf0]
        %v267 = vor.u32 %v265, %v266
        %s268 = sshra.s32 %s256, 3
        %s269 = sand.u32 %s256, 7
        %s270 = sshra.s32 %s256, 3
        %s271 = sand.u32 %s256, 7
        %s272 = smul.u32 %s268, 8
        %s273 = smul.u32 %s272, 8
        %s274 = sadd.s32 %s273, %s271
        %s275 = scalar_lea.vmem [#allocation7], %s274
        %v276 = vld [vmem:[%s275] ss:$8 sm:$0xf]
        %v277 = vld [vmem:[%s275] ss:$8 sm:$0xf0]
        %v278 = vor.u32 %v276, %v277
        %v279 = vadd.f32 %v267, %v278
        %s280 = scalar_lea.vmem %s197, %s263 [#allocation9]
        %281 = vst [vmem:[%s280] ss:$8 sm:$0xf] %v279
        %282 = vst [vmem:[%s280] ss:$8 sm:$0xf0] %v279
        %s283 = sadd.s32 0, 3
        %s284 = sadd.s32 %s200, %s283
        %s285 = sld [smem:[#allocation3 + %s284]]
        %s286 = sshra.s32 %s283, 3
        %s287 = sand.u32 %s283, 7
        %s288 = sshra.s32 %s283, 3
        %s289 = sand.u32 %s283, 7
        %s290 = smul.u32 %s286, 8
        %s291 = smul.u32 %s290, 8
        %s292 = sadd.s32 %s291, %s289
        %s293 = scalar_lea.vmem %s173, %s292 [#allocation4]
        %v294 = vld [vmem:[%s293] ss:$8 sm:$0xf]
        %v295 = vld [vmem:[%s293] ss:$8 sm:$0xf0]
        %v296 = vor.u32 %v294, %v295
        %s297 = sshra.s32 %s285, 3
        %s298 = sand.u32 %s285, 7
        %s299 = sshra.s32 %s285, 3
        %s300 = sand.u32 %s285, 7
        %s301 = smul.u32 %s297, 8
        %s302 = smul.u32 %s301, 8
        %s303 = sadd.s32 %s302, %s300
        %s304 = scalar_lea.vmem [#allocation7], %s303
        %v305 = vld [vmem:[%s304] ss:$8 sm:$0xf]
        %v306 = vld [vmem:[%s304] ss:$8 sm:$0xf0]
        %v307 = vor.u32 %v305, %v306
        %v308 = vadd.f32 %v296, %v307
        %s309 = scalar_lea.vmem %s197, %s292 [#allocation9]
        %310 = vst [vmem:[%s309] ss:$8 sm:$0xf] %v308
        %311 = vst [vmem:[%s309] ss:$8 sm:$0xf0] %v308
        %s312 = sadd.s32 0, 4
        %s313 = sadd.s32 %s200, %s312
        %s314 = sld [smem:[#allocation3 + %s313]]
        %s315 = sshra.s32 %s312, 3
        %s316 = sand.u32 %s312, 7
        %s317 = sshra.s32 %s312, 3
        %s318 = sand.u32 %s312, 7
        %s319 = smul.u32 %s315, 8
        %s320 = smul.u32 %s319, 8
        %s321 = sadd.s32 %s320, %s318
        %s322 = scalar_lea.vmem %s173, %s321 [#allocation4]
        %v323 = vld [vmem:[%s322] ss:$8 sm:$0xf]
        %v324 = vld [vmem:[%s322] ss:$8 sm:$0xf0]
        %v325 = vor.u32 %v323, %v324
        %s326 = sshra.s32 %s314, 3
        %s327 = sand.u32 %s314, 7
        %s328 = sshra.s32 %s314, 3
        %s329 = sand.u32 %s314, 7
        %s330 = smul.u32 %s326, 8
        %s331 = smul.u32 %s330, 8
        %s332 = sadd.s32 %s331, %s329
        %s333 = scalar_lea.vmem [#allocation7], %s332
        %v334 = vld [vmem:[%s333] ss:$8 sm:$0xf]
        %v335 = vld [vmem:[%s333] ss:$8 sm:$0xf0]
        %v336 = vor.u32 %v334, %v335
        %v337 = vadd.f32 %v325, %v336
        %s338 = scalar_lea.vmem %s197, %s321 [#allocation9]
        %339 = vst [vmem:[%s338] ss:$8 sm:$0xf] %v337
        %340 = vst [vmem:[%s338] ss:$8 sm:$0xf0] %v337
        %s341 = sadd.s32 0, 5
        %s342 = sadd.s32 %s200, %s341
        %s343 = sld [smem:[#allocation3 + %s342]]
        %s344 = sshra.s32 %s341, 3
        %s345 = sand.u32 %s341, 7
        %s346 = sshra.s32 %s341, 3
        %s347 = sand.u32 %s341, 7
        %s348 = smul.u32 %s344, 8
        %s349 = smul.u32 %s348, 8
        %s350 = sadd.s32 %s349, %s347
        %s351 = scalar_lea.vmem %s173, %s350 [#allocation4]
        %v352 = vld [vmem:[%s351] ss:$8 sm:$0xf]
        %v353 = vld [vmem:[%s351] ss:$8 sm:$0xf0]
        %v354 = vor.u32 %v352, %v353
        %s355 = sshra.s32 %s343, 3
        %s356 = sand.u32 %s343, 7
        %s357 = sshra.s32 %s343, 3
        %s358 = sand.u32 %s343, 7
        %s359 = smul.u32 %s355, 8
        %s360 = smul.u32 %s359, 8
        %s361 = sadd.s32 %s360, %s358
        %s362 = scalar_lea.vmem [#allocation7], %s361
        %v363 = vld [vmem:[%s362] ss:$8 sm:$0xf]
        %v364 = vld [vmem:[%s362] ss:$8 sm:$0xf0]
        %v365 = vor.u32 %v363, %v364
        %v366 = vadd.f32 %v354, %v365
        %s367 = scalar_lea.vmem %s197, %s350 [#allocation9]
        %368 = vst [vmem:[%s367] ss:$8 sm:$0xf] %v366
        %369 = vst [vmem:[%s367] ss:$8 sm:$0xf0] %v366
        %s370 = sadd.s32 0, 6
        %s371 = sadd.s32 %s200, %s370
        %s372 = sld [smem:[#allocation3 + %s371]]
        %s373 = sshra.s32 %s370, 3
        %s374 = sand.u32 %s370, 7
        %s375 = sshra.s32 %s370, 3
        %s376 = sand.u32 %s370, 7
        %s377 = smul.u32 %s373, 8
        %s378 = smul.u32 %s377, 8
        %s379 = sadd.s32 %s378, %s376
        %s380 = scalar_lea.vmem %s173, %s379 [#allocation4]
        %v381 = vld [vmem:[%s380] ss:$8 sm:$0xf]
        %v382 = vld [vmem:[%s380] ss:$8 sm:$0xf0]
        %v383 = vor.u32 %v381, %v382
        %s384 = sshra.s32 %s372, 3
        %s385 = sand.u32 %s372, 7
        %s386 = sshra.s32 %s372, 3
        %s387 = sand.u32 %s372, 7
        %s388 = smul.u32 %s384, 8
        %s389 = smul.u32 %s388, 8
        %s390 = sadd.s32 %s389, %s387
        %s391 = scalar_lea.vmem [#allocation7], %s390
        %v392 = vld [vmem:[%s391] ss:$8 sm:$0xf]
        %v393 = vld [vmem:[%s391] ss:$8 sm:$0xf0]
        %v394 = vor.u32 %v392, %v393
        %v395 = vadd.f32 %v383, %v394
        %s396 = scalar_lea.vmem %s197, %s379 [#allocation9]
        %397 = vst [vmem:[%s396] ss:$8 sm:$0xf] %v395
        %398 = vst [vmem:[%s396] ss:$8 sm:$0xf0] %v395
        %s399 = sadd.s32 0, 7
        %s400 = sadd.s32 %s200, %s399
        %s401 = sld [smem:[#allocation3 + %s400]]
        %s402 = sshra.s32 %s399, 3
        %s403 = sand.u32 %s399, 7
        %s404 = sshra.s32 %s399, 3
        %s405 = sand.u32 %s399, 7
        %s406 = smul.u32 %s402, 8
        %s407 = smul.u32 %s406, 8
        %s408 = sadd.s32 %s407, %s405
        %s409 = scalar_lea.vmem %s173, %s408 [#allocation4]
        %v410 = vld [vmem:[%s409] ss:$8 sm:$0xf]
        %v411 = vld [vmem:[%s409] ss:$8 sm:$0xf0]
        %v412 = vor.u32 %v410, %v411
        %s413 = sshra.s32 %s401, 3
        %s414 = sand.u32 %s401, 7
        %s415 = sshra.s32 %s401, 3
        %s416 = sand.u32 %s401, 7
        %s417 = smul.u32 %s413, 8
        %s418 = smul.u32 %s417, 8
        %s419 = sadd.s32 %s418, %s416
        %s420 = scalar_lea.vmem [#allocation7], %s419
        %v421 = vld [vmem:[%s420] ss:$8 sm:$0xf]
        %v422 = vld [vmem:[%s420] ss:$8 sm:$0xf0]
        %v423 = vor.u32 %v421, %v422
        %v424 = vadd.f32 %v412, %v423
        %s425 = scalar_lea.vmem %s197, %s408 [#allocation9]
        %426 = vst [vmem:[%s425] ss:$8 sm:$0xf] %v424
        %427 = vst [vmem:[%s425] ss:$8 sm:$0xf0] %v424
        %s428 = sand.u32 %s96, 1
        %s429 = scalar_lea.sflag [#allocation6], %s428
        %s430 = sand.u32 %s96, 1
        %s431 = smul.addr %s430, 64
        %s432 = scalar_lea.vmem [#allocation9], %s431
        // Predicated region
        $region37: #{tpu_custom_call.1} parent=27 // pred_check
          %p433 = pneg %p106
        $region38: #{tpu_custom_call.1} parent=27 // pred_check_branch
          %435 = sbr.rel (%p433) target = $region40
        $region39: #{tpu_custom_call.1} parent=27 // pred_region
          %s437 = ssub.s32 1024, 1024
          %438 = vsyncadd %s429, %s437
          %s439 = smul.addr %s30, 8
          %s440 = smul.addr %s29, 16
          %s441 = sadd.s32 %s439, %s440
          %s442 = smul.addr %s441, 128
          %s443 = scalar_lea.hbm %s3, %s442
          %s445 = sshll.u32 %s432, 4
          %s446 = int_to_ptr.vmem [resolvable:$true] %s445
          %448 = dma.vmem_to_hbm [thread:$0]  %s446, 1024, %s443, %s429
        $region40: #{tpu_custom_call.1} parent=27 // pred_fallthru
          _
      $region28: #{tpu_custom_call.1} parent=5 // pred_fallthru
        _
      %p449 = scmp.le.s32.totalorder 2, %s20
      // Predicated region
      $region41: #{tpu_custom_call.1} parent=5 // pred_check
        %p450 = pneg %p449
      $region42: #{tpu_custom_call.1} parent=5 // pred_check_branch
        %452 = sbr.rel (%p450) target = $region44
      $region43: #{tpu_custom_call.1} parent=5 // pred_region
        %s453 = ssub.s32 %s20, 2
        // Predicated region
        $region45: #{tpu_custom_call.1} parent=43 // pred_check
          %p454 = pneg %p112
        $region46: #{tpu_custom_call.1} parent=43 // pred_check_branch
          %456 = sbr.rel (%p454) target = $region48
        $region47: #{tpu_custom_call.1} parent=43 // pred_region
          %s457 = sand.u32 %s97, 1
          %s458 = scalar_lea.sflag [#allocation6], %s457
          %s459 = sand.u32 %s97, 1
          %s460 = smul.addr %s459, 64
          %s461 = scalar_lea.vmem [#allocation9], %s460
          %462 = dma.done %s458, 1024
        $region48: #{tpu_custom_call.1} parent=43 // pred_fallthru
          _
      $region44: #{tpu_custom_call.1} parent=5 // pred_fallthru
        _
    $region6: #{tpu_custom_call.1} parent=1 // loop_footer
      %s24 = sadd.s32 1, %s20
    $region7: #{tpu_custom_call.1} parent=1 // loop_footer_branch
      %19 = sbr.rel target = $region3
    $region8: #{tpu_custom_call.1} parent=1 // loop_exit
      _
    %463 = vsyncpa [#allocation5], 1
    %s464 = scalar_lea.sflag [#allocation5], 1
    %465 = vsyncpa %s464, 1
    %466 = vsyncpa [#allocation8], 1
    %467 = vsyncpa [#allocation6], 1
    %s468 = scalar_lea.sflag [#allocation6], 1
    %469 = vsyncpa %s468, 1

</llo_original>
